<compile_context>
chip_gen: v7x
topology: tpu7x:2x2x1
jax: 0.10.0
libtpu: 0.0.40
codegen_flags: <defaults>
</compile_context>

<pallas_src>
import functools

import jax
import jax.numpy as jnp
from jax.experimental import pallas as pl
from jax.experimental.pallas import tpu as pltpu


def _round_up(n: int, m: int) -> int:
    return (n + m - 1) // m * m


def _fused_mlp_kernel(x_ref, w_ref, b_ref, o_ref, *,
                      num_layers: int, final_relu_layer: int):
    """Whole MLP in one kernel; activation stays in vregs between layers.

    x_ref: [Bp, PAD]       f32   zero-padded input
    w_ref: [L, PAD, PAD]   bf16  zero-padded, pre-transposed weights (x @ W)
    b_ref: [L, 1, PAD]     f32   zero-padded biases
    o_ref: [Bp, PAD]       f32   padded output (wrapper slices valid region)
    """
    x = x_ref[...]                                    # f32 activation
    for i in range(num_layers):                       # unrolled at trace time
        if i < final_relu_layer:
            x = jnp.maximum(x, 0.0)                   # ReLU in f32 (VPU)
        # bf16 MXU inputs, f32 accumulation.
        acc = jnp.dot(x.astype(jnp.bfloat16), w_ref[i],
                      preferred_element_type=jnp.float32)
        x = acc + b_ref[i]                            # bias add in f32
    o_ref[...] = x.astype(o_ref.dtype)


def init_mlp_params(layer_sizes, key):
    """Deterministic parameter init matching nn.Linear shapes.

    Returns list of (w_t, b) with w_t = W.T of shape [in, out], b of [1, out],
    both float32 master params.
    """
    params = []
    for i in range(len(layer_sizes) - 1):
        din, dout = int(layer_sizes[i]), int(layer_sizes[i + 1])
        key, kw, kb = jax.random.split(key, 3)
        bound = 1.0 / jnp.sqrt(din)  # PyTorch default U(-1/sqrt(in), 1/sqrt(in))
        w = jax.random.uniform(kw, (dout, din), jnp.float32, -bound, bound)
        b = jax.random.uniform(kb, (1, dout), jnp.float32, -bound, bound)
        params.append((w.T, b))
    return params


def pack_params(params, *, lane_pad=128):
    """Build the packed slabs ONCE (hoisted out of the forward path).

    Returns (w_slab [L,PAD,PAD] bf16, b_slab [L,1,PAD] f32, dims, pad).
    Pad regions are exactly zero so padded columns/rows stay mathematically
    inert through every layer.
    """
    num_layers = len(params)
    dims = [params[0][0].shape[0]] + [w_t.shape[1] for w_t, _ in params]
    pad = max(_round_up(d, lane_pad) for d in dims)   # common padded width

    w_slab = jnp.zeros((num_layers, pad, pad), jnp.bfloat16)
    b_slab = jnp.zeros((num_layers, 1, pad), jnp.float32)
    for i, (w_t, b) in enumerate(params):
        din, dout = w_t.shape
        w_slab = w_slab.at[i, :din, :dout].set(w_t.astype(jnp.bfloat16))
        b_slab = b_slab.at[i, :, :dout].set(b.reshape(1, dout))
    # Materialize on device now; forward calls just reuse these buffers.
    w_slab = jax.device_put(jax.block_until_ready(w_slab))
    b_slab = jax.device_put(jax.block_until_ready(b_slab))
    return w_slab, b_slab, tuple(int(d) for d in dims), pad


@functools.partial(jax.jit,
                   static_argnames=("d_in", "d_out", "final_relu",
                                    "sublane_pad"))
def mlp_forward(x, w_slab, b_slab, *, d_in, d_out, final_relu=False,
                sublane_pad=8):
    """Forward pass of MLP(layer_sizes, final_relu) on a [B, d_in] input,
    using pre-packed slabs from pack_params()."""
    num_layers, pad, _ = w_slab.shape
    final_relu_layer = num_layers if final_relu else num_layers - 1

    B = x.shape[0]
    bp = _round_up(B, sublane_pad)

    x = x.astype(jnp.float32)
    if (bp, pad) == (B, d_in):
        x_pad = x                                     # already aligned: no pad op
    else:
        x_pad = jnp.zeros((bp, pad), jnp.float32).at[:B, :d_in].set(x)

    kernel = functools.partial(_fused_mlp_kernel, num_layers=num_layers,
                               final_relu_layer=final_relu_layer)

    # VMEM budget computed from actual operand bytes (+2x headroom), clamped.
    operand_bytes = (x_pad.size * 4            # padded input (f32)
                     + w_slab.size * 2         # weight slab (bf16)
                     + b_slab.size * 4         # bias slab (f32)
                     + bp * pad * 4)           # padded output (f32)
    vmem_limit = int(min(max(2 * operand_bytes, 1 << 20), 64 * 1024 * 1024))

    out_pad = pl.pallas_call(
        kernel,
        out_shape=jax.ShapeDtypeStruct((bp, pad), jnp.float32),
        # No grid -> nothing to pipeline: place the full arrays straight into
        # VMEM (single-buffered), avoiding double-buffering of the weight slab.
        in_specs=[
            pl.BlockSpec(memory_space=pltpu.MemorySpace.VMEM),   # x
            pl.BlockSpec(memory_space=pltpu.MemorySpace.VMEM),   # weights
            pl.BlockSpec(memory_space=pltpu.MemorySpace.VMEM),   # biases
        ],
        out_specs=pl.BlockSpec(memory_space=pltpu.MemorySpace.VMEM),
        compiler_params=pltpu.CompilerParams(vmem_limit_bytes=vmem_limit),
    )(x_pad, w_slab, b_slab)

    return out_pad[:B, :d_out]


def mlp_reference(x, params, final_relu=False):
    """Plain-JAX f32 reference (mirrors the PyTorch Sequential)."""
    num_layers = len(params)
    final_relu_layer = num_layers if final_relu else num_layers - 1
    for i, (w_t, b) in enumerate(params):
        if i < final_relu_layer:
            x = jnp.maximum(x, 0.0)
        x = x @ w_t + b
    return x


if __name__ == "__main__":
    key = jax.random.PRNGKey(0)
    layer_sizes = [32, 64, 64, 16]
    batch = 8

    k_x, k_p = jax.random.split(key)
    x = jax.random.normal(k_x, (batch, layer_sizes[0]), jnp.float32)
    params = init_mlp_params(layer_sizes, k_p)

    # Pack slabs ONCE (hoisted out of the per-call path).
    w_slab, b_slab, dims, pad = pack_params(params)

    out = mlp_forward(x, w_slab, b_slab,
                      d_in=dims[0], d_out=dims[-1], final_relu=False)
    out = jax.block_until_ready(out)

    # Second call reuses the compiled kernel and the cached slabs (no packing).
    out2 = jax.block_until_ready(
        mlp_forward(x, w_slab, b_slab,
                    d_in=dims[0], d_out=dims[-1], final_relu=False))

    ref = mlp_reference(x, params, final_relu=False)
    assert out.shape == (batch, layer_sizes[-1])
    # bf16 MXU inputs vs f32 reference -> loosened tolerance.
    assert jnp.allclose(out, ref, atol=2e-2, rtol=2e-2), "mismatch vs reference"
    assert jnp.allclose(out, out2), "second call mismatch"

    print("KERNEL_OK")
</pallas_src>

<mosaic_0001>
module attributes {stable_mosaic.version = 11 : i64} {
  func.func @_fused_mlp_kernel(%arg0: memref<8x128xf32, #tpu.memory_space<vmem>>, %arg1: memref<3x128x128xbf16, #tpu.memory_space<vmem>>, %arg2: memref<3x1x128xf32, #tpu.memory_space<vmem>>, %arg3: memref<8x128xf32, #tpu.memory_space<vmem>>) attributes {dimension_semantics = [], scalar_prefetch = 0 : i64, scratch_operands = 0 : i64, tpu.core_type = #tpu.core_type<tc>} {
    %c0 = arith.constant 0 : index
    %c0_0 = arith.constant 0 : index
    %0 = vector.load %arg0[%c0, %c0_0] : memref<8x128xf32, #tpu.memory_space<vmem>>, vector<8x128xf32>
    %cst = arith.constant 0.000000e+00 : f32
    %1 = vector.broadcast %cst : f32 to vector<8x128xf32>
    %2 = arith.maximumf %0, %1 : vector<8x128xf32>
    %3 = arith.truncf %2 : vector<8x128xf32> to vector<8x128xbf16>
    %c0_1 = arith.constant 0 : index
    %c0_2 = arith.constant 0 : index
    %c0_3 = arith.constant 0 : index
    %4 = vector.load %arg1[%c0_1, %c0_2, %c0_3] : memref<3x128x128xbf16, #tpu.memory_space<vmem>>, vector<1x128x128xbf16>
    %5 = vector.shape_cast %4 : vector<1x128x128xbf16> to vector<128x128xbf16>
    %cst_4 = arith.constant dense<0.000000e+00> : vector<8x128xf32>
    %6 = tpu.matmul %3, %5, %cst_4 {dimension_numbers = #tpu.dot_dimension_numbers<[1], [0], [0], [1], [0, 0, 1, 1], [], []>} : vector<8x128xbf16>, vector<128x128xbf16>, vector<8x128xf32> -> vector<8x128xf32>
    %c0_5 = arith.constant 0 : index
    %c0_6 = arith.constant 0 : index
    %c0_7 = arith.constant 0 : index
    %7 = vector.load %arg2[%c0_5, %c0_6, %c0_7] : memref<3x1x128xf32, #tpu.memory_space<vmem>>, vector<1x1x128xf32>
    %8 = vector.shape_cast %7 : vector<1x1x128xf32> to vector<1x128xf32>
    %9 = vector.broadcast %8 : vector<1x128xf32> to vector<8x128xf32>
    %10 = arith.addf %6, %9 : vector<8x128xf32>
    %cst_8 = arith.constant 0.000000e+00 : f32
    %11 = vector.broadcast %cst_8 : f32 to vector<8x128xf32>
    %12 = arith.maximumf %10, %11 : vector<8x128xf32>
    %13 = arith.truncf %12 : vector<8x128xf32> to vector<8x128xbf16>
    %c1 = arith.constant 1 : index
    %c0_9 = arith.constant 0 : index
    %c0_10 = arith.constant 0 : index
    %14 = vector.load %arg1[%c1, %c0_9, %c0_10] : memref<3x128x128xbf16, #tpu.memory_space<vmem>>, vector<1x128x128xbf16>
    %15 = vector.shape_cast %14 : vector<1x128x128xbf16> to vector<128x128xbf16>
    %cst_11 = arith.constant dense<0.000000e+00> : vector<8x128xf32>
    %16 = tpu.matmul %13, %15, %cst_11 {dimension_numbers = #tpu.dot_dimension_numbers<[1], [0], [0], [1], [0, 0, 1, 1], [], []>} : vector<8x128xbf16>, vector<128x128xbf16>, vector<8x128xf32> -> vector<8x128xf32>
    %c1_12 = arith.constant 1 : index
    %c0_13 = arith.constant 0 : index
    %c0_14 = arith.constant 0 : index
    %17 = vector.load %arg2[%c1_12, %c0_13, %c0_14] : memref<3x1x128xf32, #tpu.memory_space<vmem>>, vector<1x1x128xf32>
    %18 = vector.shape_cast %17 : vector<1x1x128xf32> to vector<1x128xf32>
    %19 = vector.broadcast %18 : vector<1x128xf32> to vector<8x128xf32>
    %20 = arith.addf %16, %19 : vector<8x128xf32>
    %21 = arith.truncf %20 : vector<8x128xf32> to vector<8x128xbf16>
    %c2 = arith.constant 2 : index
    %c0_15 = arith.constant 0 : index
    %c0_16 = arith.constant 0 : index
    %22 = vector.load %arg1[%c2, %c0_15, %c0_16] : memref<3x128x128xbf16, #tpu.memory_space<vmem>>, vector<1x128x128xbf16>
    %23 = vector.shape_cast %22 : vector<1x128x128xbf16> to vector<128x128xbf16>
    %cst_17 = arith.constant dense<0.000000e+00> : vector<8x128xf32>
    %24 = tpu.matmul %21, %23, %cst_17 {dimension_numbers = #tpu.dot_dimension_numbers<[1], [0], [0], [1], [0, 0, 1, 1], [], []>} : vector<8x128xbf16>, vector<128x128xbf16>, vector<8x128xf32> -> vector<8x128xf32>
    %c2_18 = arith.constant 2 : index
    %c0_19 = arith.constant 0 : index
    %c0_20 = arith.constant 0 : index
    %25 = vector.load %arg2[%c2_18, %c0_19, %c0_20] : memref<3x1x128xf32, #tpu.memory_space<vmem>>, vector<1x1x128xf32>
    %26 = vector.shape_cast %25 : vector<1x1x128xf32> to vector<1x128xf32>
    %27 = vector.broadcast %26 : vector<1x128xf32> to vector<8x128xf32>
    %28 = arith.addf %24, %27 : vector<8x128xf32>
    %c0_21 = arith.constant 0 : index
    %c0_22 = arith.constant 0 : index
    %29 = vector.load %arg3[%c0_21, %c0_22] : memref<8x128xf32, #tpu.memory_space<vmem>>, vector<8x128xf32>
    tpu.vector_store %arg3[%c0_21, %c0_22], %28 {strides = array<i32>} : memref<8x128xf32, #tpu.memory_space<vmem>>, vector<8x128xf32>,
    return
  }
}

</mosaic_0001>

<llo_original>
// kernel: mlp_forward.1
$region0: #{mlp_forward.1}
  #allocation0 [shape = 'u32[]', space=smem, size = 0x4, offset = 0x4, fixed_abs, tag = 'smem constant byte address 0x4 - core index']
  #allocation1 [shape = 'u32[144,128]{1,0:T(1,128)}', space=vmem, size = 0x12000, scoped, tag = 'internal scratch']
  %s0 = inlined_call_operand.vmem [shape: f32[8,128], index: 0, kind: input, shape index: {}]
  %s1 = inlined_call_operand.hbm [shape: bf16[3,128,128], index: 1, kind: input, shape index: {}]
  %s2 = inlined_call_operand.vmem [shape: f32[3,1,128], index: 2, kind: input, shape index: {}]
  %s3 = inlined_call_operand.hbm [shape: f32[8,128], index: 3, kind: output, shape index: {}]
  %s4 = sld [smem:[#allocation0]]
  $region26: #{mlp_forward.1} parent=0
    _
  %s6 = ssub.s32 1, %s4
  %s7 = scalar_select 0, %s6, %s4
  $region1: #{mlp_forward.1} parent=0
    #allocation2 [shape = 'u8[98304]{0}', space=vmem, size = 0x18000, scoped, tag = 'input window, operand 1, single buffered']
    #allocation3 [shape = 's32[1]{0}', space=sflag, size = 0x4, scoped, tag = 'scoped memory for mlp_forward.1']
    #allocation4 [shape = 's32[1]{0}', space=sflag, size = 0x4, scoped, tag = 'scoped memory for mlp_forward.1']
    #allocation5 [shape = 'u8[4096]{0}', space=vmem, size = 0x1000, scoped, tag = 'output window, operand 0, single buffered']
    %8 = vsyncpa [#allocation3], 0
    %9 = vsyncpa [#allocation4], 0
    // Predicated region
    $region2: #{mlp_forward.1} parent=1 // pred_check
      _
    $region3: #{mlp_forward.1} parent=1 // pred_check_branch
      %11 = sbr.rel (0) target = $region5
    $region4: #{mlp_forward.1} parent=1 // pred_region
      _
    $region5: #{mlp_forward.1} parent=1 // pred_fallthru
      _
    // Predicated region
    $region6: #{mlp_forward.1} parent=1 // pred_check
      _
    $region7: #{mlp_forward.1} parent=1 // pred_check_branch
      %13 = sbr.rel (0) target = $region9
    $region8: #{mlp_forward.1} parent=1 // pred_region
      %s15 = ssub.s32 3072, 3072
      %16 = vsyncadd [#allocation3], %s15
      %s17 = sshll.u32 [#allocation2], 4
      %s18 = int_to_ptr.vmem [resolvable:$true] %s17
      %23 = dma.hbm_to_vmem [thread:$0]  %s1, 3072, %s18, [#allocation3], 64, 64, 4
    $region9: #{mlp_forward.1} parent=1 // pred_fallthru
      _
    // Predicated region
    $region10: #{mlp_forward.1} parent=1 // pred_check
      _
    $region11: #{mlp_forward.1} parent=1 // pred_check_branch
      %25 = sbr.rel (0) target = $region13
    $region12: #{mlp_forward.1} parent=1 // pred_region
      _
    $region13: #{mlp_forward.1} parent=1 // pred_fallthru
      _
    // Predicated region
    $region14: #{mlp_forward.1} parent=1 // pred_check
      _
    $region15: #{mlp_forward.1} parent=1 // pred_check_branch
      %27 = sbr.rel (0) target = $region17
    $region16: #{mlp_forward.1} parent=1 // pred_region
      %28 = dma.done [#allocation3], 3072
    $region17: #{mlp_forward.1} parent=1 // pred_fallthru
      _
    %v30 = vld [vmem:[%s0] sm:$0xff]
    %v31 = vmax.f32 %v30, 0.0
    %v32 = vpack.c.bf16 %v31, %v31
    %v33 = vld [vmem:[#allocation2] sm:$0xf]
    %v34 = vld [vmem:[#allocation2 + $0x4] sm:$0xf]
    %v35 = vld [vmem:[#allocation2 + $0x8] sm:$0xf]
    %v36 = vld [vmem:[#allocation2 + $0xc] sm:$0xf]
    %v37 = vld [vmem:[#allocation2 + $0x10] sm:$0xf]
    %v38 = vld [vmem:[#allocation2 + $0x14] sm:$0xf]
    %v39 = vld [vmem:[#allocation2 + $0x18] sm:$0xf]
    %v40 = vld [vmem:[#allocation2 + $0x1c] sm:$0xf]
    %v41 = vld [vmem:[#allocation2 + $0x20] sm:$0xf]
    %v42 = vld [vmem:[#allocation2 + $0x24] sm:$0xf]
    %v43 = vld [vmem:[#allocation2 + $0x28] sm:$0xf]
    %v44 = vld [vmem:[#allocation2 + $0x2c] sm:$0xf]
    %v45 = vld [vmem:[#allocation2 + $0x30] sm:$0xf]
    %v46 = vld [vmem:[#allocation2 + $0x34] sm:$0xf]
    %v47 = vld [vmem:[#allocation2 + $0x38] sm:$0xf]
    %v48 = vld [vmem:[#allocation2 + $0x3c] sm:$0xf]
    %v49 = vld [vmem:[%s2] sm:$0x1]
    %v51 = vlaneseq
    %v52 = vshrl.u32 %v51, 7
    %v53 = vsub.s32 0, %v52
    %v54 = vrot.slane %v49, %v53
    %v72 = vunpack.c.l.b16 %v33
    %v73 = vunpack.c.l.b16 %v34
    %v74 = vunpack.c.l.b16 %v35
    %v75 = vunpack.c.l.b16 %v36
    %v76 = vunpack.c.l.b16 %v37
    %v77 = vunpack.c.l.b16 %v38
    %v78 = vunpack.c.l.b16 %v39
    %v79 = vunpack.c.l.b16 %v40
    %v80 = vunpack.c.l.b16 %v41
    %v81 = vunpack.c.l.b16 %v42
    %v82 = vunpack.c.l.b16 %v43
    %v83 = vunpack.c.l.b16 %v44
    %v84 = vunpack.c.l.b16 %v45
    %v85 = vunpack.c.l.b16 %v46
    %v86 = vunpack.c.l.b16 %v47
    %v87 = vunpack.c.l.b16 %v48
    %v88 = vpack.c.b16 %v73, %v72
    %v89 = vpack.c.b16 %v75, %v74
    %v90 = vpack.c.b16 %v77, %v76
    %v91 = vpack.c.b16 %v79, %v78
    %v92 = vpack.c.b16 %v81, %v80
    %v93 = vpack.c.b16 %v83, %v82
    %v94 = vpack.c.b16 %v85, %v84
    %v95 = vpack.c.b16 %v87, %v86
    %104 = vmatprep.subr.bf16.mxu0 0
    %105 = vmatpush1.bf16.msra.mxu0 %v88
    %106 = vmatprep.subr.bf16.mxu0 0
    %107 = vmatpush1.bf16.msra.mxu0 %v89
    %108 = vmatprep.subr.bf16.mxu0 0
    %109 = vmatpush1.bf16.msra.mxu0 %v90
    %110 = vmatprep.subr.bf16.mxu0 0
    %111 = vmatpush1.bf16.msra.mxu0 %v91
    %112 = vmatprep.subr.bf16.mxu0 0
    %113 = vmatpush1.bf16.msra.mxu0 %v92
    %114 = vmatprep.subr.bf16.mxu0 0
    %115 = vmatpush1.bf16.msra.mxu0 %v93
    %116 = vmatprep.subr.bf16.mxu0 0
    %117 = vmatpush1.bf16.msra.mxu0 %v94
    %118 = vmatprep.subr.bf16.mxu0 0
    %119 = vmatpush1.bf16.msra.mxu0 %v95
    %120 = vmatprep.subr.bf16.mxu0 0
    %121 = vmatpush1.bf16.msra.mxu0 0
    %122 = vmatprep.subr.bf16.mxu0 0
    %123 = vmatpush1.bf16.msra.mxu0 0
    %124 = vmatprep.subr.bf16.mxu0 0
    %125 = vmatpush1.bf16.msra.mxu0 0
    %126 = vmatprep.subr.bf16.mxu0 0
    %127 = vmatpush1.bf16.msra.mxu0 0
    %128 = vmatprep.subr.bf16.mxu0 0
    %129 = vmatpush1.bf16.msra.mxu0 0
    %130 = vmatprep.subr.bf16.mxu0 0
    %131 = vmatpush1.bf16.msra.mxu0 0
    %132 = vmatprep.subr.bf16.mxu0 0
    %133 = vmatpush1.bf16.msra.mxu0 0
    %134 = vmatprep.subr.bf16.mxu0 0
    %135 = vmatpush1.bf16.msra.mxu0 0
    %136 = vmatprep.mubr.bf16.mxu0 0
    %137 = vmatmul.mubr.bf16.gmra.mrb[0].mxu0 %v32
    %v138 = vpop.f32.mrb[0].mxu0
    %v139 = vadd.f32 %v54, %v138
    %v140 = vpop.f32.mrb[0].mxu0
    %v141 = vpop.f32.mrb[0].mxu0
    %v142 = vpop.f32.mrb[0].mxu0
    %143 = vdwg.mxu0
    %v144 = vmax.f32 %v139, 0.0
    %v145 = vpack.c.bf16 %v144, %v144
    %s146 = scalar_lea.vmem [#allocation2], 64
    %v147 = vld [vmem:[%s146] sm:$0xf]
    %v148 = vld [vmem:[%s146 + $0x4] sm:$0xf]
    %v149 = vld [vmem:[%s146 + $0x8] sm:$0xf]
    %v150 = vld [vmem:[%s146 + $0xc] sm:$0xf]
    %v151 = vld [vmem:[%s146 + $0x10] sm:$0xf]
    %v152 = vld [vmem:[%s146 + $0x14] sm:$0xf]
    %v153 = vld [vmem:[%s146 + $0x18] sm:$0xf]
    %v154 = vld [vmem:[%s146 + $0x1c] sm:$0xf]
    %v155 = vld [vmem:[%s146 + $0x20] sm:$0xf]
    %v156 = vld [vmem:[%s146 + $0x24] sm:$0xf]
    %v157 = vld [vmem:[%s146 + $0x28] sm:$0xf]
    %v158 = vld [vmem:[%s146 + $0x2c] sm:$0xf]
    %v159 = vld [vmem:[%s146 + $0x30] sm:$0xf]
    %v160 = vld [vmem:[%s146 + $0x34] sm:$0xf]
    %v161 = vld [vmem:[%s146 + $0x38] sm:$0xf]
    %v162 = vld [vmem:[%s146 + $0x3c] sm:$0xf]
    %s163 = scalar_lea.vmem %s2, 1
    %v164 = vld [vmem:[%s163] sm:$0x1]
    %v166 = vlaneseq
    %v167 = vshrl.u32 %v166, 7
    %v168 = vsub.s32 0, %v167
    %v169 = vrot.slane %v164, %v168
    %v187 = vunpack.c.l.b16 %v147
    %v188 = vunpack.c.l.b16 %v148
    %v189 = vunpack.c.l.b16 %v149
    %v190 = vunpack.c.l.b16 %v150
    %v191 = vunpack.c.l.b16 %v151
    %v192 = vunpack.c.l.b16 %v152
    %v193 = vunpack.c.l.b16 %v153
    %v194 = vunpack.c.l.b16 %v154
    %v195 = vunpack.c.l.b16 %v155
    %v196 = vunpack.c.l.b16 %v156
    %v197 = vunpack.c.l.b16 %v157
    %v198 = vunpack.c.l.b16 %v158
    %v199 = vunpack.c.l.b16 %v159
    %v200 = vunpack.c.l.b16 %v160
    %v201 = vunpack.c.l.b16 %v161
    %v202 = vunpack.c.l.b16 %v162
    %v203 = vpack.c.b16 %v188, %v187
    %v204 = vpack.c.b16 %v190, %v189
    %v205 = vpack.c.b16 %v192, %v191
    %v206 = vpack.c.b16 %v194, %v193
    %v207 = vpack.c.b16 %v196, %v195
    %v208 = vpack.c.b16 %v198, %v197
    %v209 = vpack.c.b16 %v200, %v199
    %v210 = vpack.c.b16 %v202, %v201
    %219 = vmatprep.subr.bf16.mxu0 0
    %220 = vmatpush1.bf16.msra.mxu0 %v203
    %221 = vmatprep.subr.bf16.mxu0 0
    %222 = vmatpush1.bf16.msra.mxu0 %v204
    %223 = vmatprep.subr.bf16.mxu0 0
    %224 = vmatpush1.bf16.msra.mxu0 %v205
    %225 = vmatprep.subr.bf16.mxu0 0
    %226 = vmatpush1.bf16.msra.mxu0 %v206
    %227 = vmatprep.subr.bf16.mxu0 0
    %228 = vmatpush1.bf16.msra.mxu0 %v207
    %229 = vmatprep.subr.bf16.mxu0 0
    %230 = vmatpush1.bf16.msra.mxu0 %v208
    %231 = vmatprep.subr.bf16.mxu0 0
    %232 = vmatpush1.bf16.msra.mxu0 %v209
    %233 = vmatprep.subr.bf16.mxu0 0
    %234 = vmatpush1.bf16.msra.mxu0 %v210
    %235 = vmatprep.subr.bf16.mxu0 0
    %236 = vmatpush1.bf16.msra.mxu0 0
    %237 = vmatprep.subr.bf16.mxu0 0
    %238 = vmatpush1.bf16.msra.mxu0 0
    %239 = vmatprep.subr.bf16.mxu0 0
    %240 = vmatpush1.bf16.msra.mxu0 0
    %241 = vmatprep.subr.bf16.mxu0 0
    %242 = vmatpush1.bf16.msra.mxu0 0
    %243 = vmatprep.subr.bf16.mxu0 0
    %244 = vmatpush1.bf16.msra.mxu0 0
    %245 = vmatprep.subr.bf16.mxu0 0
    %246 = vmatpush1.bf16.msra.mxu0 0
    %247 = vmatprep.subr.bf16.mxu0 0
    %248 = vmatpush1.bf16.msra.mxu0 0
    %249 = vmatprep.subr.bf16.mxu0 0
    %250 = vmatpush1.bf16.msra.mxu0 0
    %251 = vmatprep.mubr.bf16.mxu0 0
    %252 = vmatmul.mubr.bf16.gmra.mrb[0].mxu0 %v145
    %v253 = vpop.f32.mrb[0].mxu0
    %v254 = vadd.f32 %v169, %v253
    %v255 = vpop.f32.mrb[0].mxu0
    %v256 = vpop.f32.mrb[0].mxu0
    %v257 = vpop.f32.mrb[0].mxu0
    %258 = vdwg.mxu0
    %v259 = vpack.c.bf16 %v254, %v254
    %s260 = scalar_lea.vmem [#allocation2], 128
    %v261 = vld [vmem:[%s260] sm:$0xf]
    %v262 = vld [vmem:[%s260 + $0x4] sm:$0xf]
    %v263 = vld [vmem:[%s260 + $0x8] sm:$0xf]
    %v264 = vld [vmem:[%s260 + $0xc] sm:$0xf]
    %v265 = vld [vmem:[%s260 + $0x10] sm:$0xf]
    %v266 = vld [vmem:[%s260 + $0x14] sm:$0xf]
    %v267 = vld [vmem:[%s260 + $0x18] sm:$0xf]
    %v268 = vld [vmem:[%s260 + $0x1c] sm:$0xf]
    %v269 = vld [vmem:[%s260 + $0x20] sm:$0xf]
    %v270 = vld [vmem:[%s260 + $0x24] sm:$0xf]
    %v271 = vld [vmem:[%s260 + $0x28] sm:$0xf]
    %v272 = vld [vmem:[%s260 + $0x2c] sm:$0xf]
    %v273 = vld [vmem:[%s260 + $0x30] sm:$0xf]
    %v274 = vld [vmem:[%s260 + $0x34] sm:$0xf]
    %v275 = vld [vmem:[%s260 + $0x38] sm:$0xf]
    %v276 = vld [vmem:[%s260 + $0x3c] sm:$0xf]
    %s277 = scalar_lea.vmem %s2, 2
    %v278 = vld [vmem:[%s277] sm:$0x1]
    %v280 = vlaneseq
    %v281 = vshrl.u32 %v280, 7
    %v282 = vsub.s32 0, %v281
    %v283 = vrot.slane %v278, %v282
    %v301 = vunpack.c.l.b16 %v261
    %v302 = vunpack.c.l.b16 %v262
    %v303 = vunpack.c.l.b16 %v263
    %v304 = vunpack.c.l.b16 %v264
    %v305 = vunpack.c.l.b16 %v265
    %v306 = vunpack.c.l.b16 %v266
    %v307 = vunpack.c.l.b16 %v267
    %v308 = vunpack.c.l.b16 %v268
    %v309 = vunpack.c.l.b16 %v269
    %v310 = vunpack.c.l.b16 %v270
    %v311 = vunpack.c.l.b16 %v271
    %v312 = vunpack.c.l.b16 %v272
    %v313 = vunpack.c.l.b16 %v273
    %v314 = vunpack.c.l.b16 %v274
    %v315 = vunpack.c.l.b16 %v275
    %v316 = vunpack.c.l.b16 %v276
    %v317 = vpack.c.b16 %v302, %v301
    %v318 = vpack.c.b16 %v304, %v303
    %v319 = vpack.c.b16 %v306, %v305
    %v320 = vpack.c.b16 %v308, %v307
    %v321 = vpack.c.b16 %v310, %v309
    %v322 = vpack.c.b16 %v312, %v311
    %v323 = vpack.c.b16 %v314, %v313
    %v324 = vpack.c.b16 %v316, %v315
    %333 = vmatprep.subr.bf16.mxu0 0
    %334 = vmatpush1.bf16.msra.mxu0 %v317
    %335 = vmatprep.subr.bf16.mxu0 0
    %336 = vmatpush1.bf16.msra.mxu0 %v318
    %337 = vmatprep.subr.bf16.mxu0 0
    %338 = vmatpush1.bf16.msra.mxu0 %v319
    %339 = vmatprep.subr.bf16.mxu0 0
    %340 = vmatpush1.bf16.msra.mxu0 %v320
    %341 = vmatprep.subr.bf16.mxu0 0
    %342 = vmatpush1.bf16.msra.mxu0 %v321
    %343 = vmatprep.subr.bf16.mxu0 0
    %344 = vmatpush1.bf16.msra.mxu0 %v322
    %345 = vmatprep.subr.bf16.mxu0 0
    %346 = vmatpush1.bf16.msra.mxu0 %v323
    %347 = vmatprep.subr.bf16.mxu0 0
    %348 = vmatpush1.bf16.msra.mxu0 %v324
    %349 = vmatprep.subr.bf16.mxu0 0
    %350 = vmatpush1.bf16.msra.mxu0 0
    %351 = vmatprep.subr.bf16.mxu0 0
    %352 = vmatpush1.bf16.msra.mxu0 0
    %353 = vmatprep.subr.bf16.mxu0 0
    %354 = vmatpush1.bf16.msra.mxu0 0
    %355 = vmatprep.subr.bf16.mxu0 0
    %356 = vmatpush1.bf16.msra.mxu0 0
    %357 = vmatprep.subr.bf16.mxu0 0
    %358 = vmatpush1.bf16.msra.mxu0 0
    %359 = vmatprep.subr.bf16.mxu0 0
    %360 = vmatpush1.bf16.msra.mxu0 0
    %361 = vmatprep.subr.bf16.mxu0 0
    %362 = vmatpush1.bf16.msra.mxu0 0
    %363 = vmatprep.subr.bf16.mxu0 0
    %364 = vmatpush1.bf16.msra.mxu0 0
    %365 = vmatprep.mubr.bf16.mxu0 0
    %366 = vmatmul.mubr.bf16.gmra.mrb[0].mxu0 %v259
    %v367 = vpop.f32.mrb[0].mxu0
    %v368 = vadd.f32 %v283, %v367
    %v369 = vpop.f32.mrb[0].mxu0
    %v370 = vpop.f32.mrb[0].mxu0
    %v371 = vpop.f32.mrb[0].mxu0
    %372 = vdwg.mxu0
    %373 = vst [vmem:[#allocation5] sm:$0xff] %v368
    // Predicated region
    $region18: #{mlp_forward.1} parent=1 // pred_check
      _
    $region19: #{mlp_forward.1} parent=1 // pred_check_branch
      %375 = sbr.rel (0) target = $region21
    $region20: #{mlp_forward.1} parent=1 // pred_region
      %s377 = ssub.s32 128, 128
      %378 = vsyncadd [#allocation4], %s377
      %s380 = sshll.u32 [#allocation5], 4
      %s381 = int_to_ptr.vmem [resolvable:$true] %s380
      %383 = dma.vmem_to_hbm [thread:$0]  %s381, 128, %s3, [#allocation4]
    $region21: #{mlp_forward.1} parent=1 // pred_fallthru
      _
    // Predicated region
    $region22: #{mlp_forward.1} parent=1 // pred_check
      _
    $region23: #{mlp_forward.1} parent=1 // pred_check_branch
      %385 = sbr.rel (0) target = $region25
    $region24: #{mlp_forward.1} parent=1 // pred_region
      %386 = dma.done [#allocation4], 128
    $region25: #{mlp_forward.1} parent=1 // pred_fallthru
      _
    %387 = vsyncpa [#allocation3], 1
    %388 = vsyncpa [#allocation4], 1

</llo_original>
